<compile_context>
chip_gen: v7x
topology: tpu7x:2x2x1
jax: 0.10.0
libtpu: 0.0.40
codegen_flags: <defaults>
</compile_context>

<pallas_src>
import jax
import jax.numpy as jnp
from jax import lax
from jax.experimental import pallas as pl
from jax.experimental.pallas import tpu as pltpu


def _round_up(n, m):
    return ((n + m - 1) // m) * m


def make_dqn_kernel(tm, chunk):
    """Fused 3-layer MLP. The (tm, in) batch tile is processed in row-chunks of
    `chunk` so intermediate activations never exceed a few vregs of live range,
    while the DMA tile (BlockSpec) stays large to amortize per-step overhead."""
    n_chunks = tm // chunk
    assert n_chunks * chunk == tm

    def kernel(x_ref, w1_ref, b1_ref, w2_ref, b2_ref, w3_ref, b3_ref, o_ref):
        # Weights / biases are VMEM-resident across the whole grid
        # (constant index_map) — load once per grid step.
        w1 = w1_ref[...]
        b1 = b1_ref[...]
        w2 = w2_ref[...]
        b2 = b2_ref[...]
        w3 = w3_ref[...]
        b3 = b3_ref[...]

        def compute(row0):
            # f32 -> bf16 cast on the VPU (hidden under DMA); MXU accumulates f32.
            x = x_ref[pl.ds(row0, chunk), :].astype(jnp.bfloat16)
            h1 = jnp.dot(x, w1, preferred_element_type=jnp.float32) + b1
            h1 = jnp.maximum(h1, 0.0)                       # f32 elementwise (v5e-safe)
            h2 = jnp.dot(h1.astype(jnp.bfloat16), w2,
                         preferred_element_type=jnp.float32) + b2
            h2 = jnp.maximum(h2, 0.0)
            out = jnp.dot(h2.astype(jnp.bfloat16), w3,
                          preferred_element_type=jnp.float32) + b3
            # Narrow (chunk, out_dim) f32 store — masked vst is fine, vst slot has slack.
            o_ref[pl.ds(row0, chunk), :] = out.astype(o_ref.dtype)

        if n_chunks == 1:
            compute(0)
        else:
            def body(c, carry):
                compute(pl.multiple_of(c * chunk, chunk))
                return carry
            lax.fori_loop(0, n_chunks, body, 0, unroll=True)

    return kernel


def _choose_tile(B, tm, chunk):
    """Batch tile: multiple of 8 (f32 sublane). Large single-tile batches are
    split into >=2 grid steps so v7x's two TensorCores both get work."""
    B8 = _round_up(max(B, 1), 8)
    if B8 > tm:
        TM = tm
    elif B >= 512:
        TM = _round_up(pl.cdiv(B, 2), 8)     # guarantee >=2 parallel grid steps
    else:
        TM = B8
    if TM % chunk != 0:
        chunk = TM                           # single in-kernel chunk
    return TM, chunk


def dqn_forward(x, params, *, tm=1024, chunk=256):
    """x: (B, input_dim) float32. Returns (B, output_dim) float32 Q-values."""
    w1, b1 = params["w1"], params["b1"]
    w2, b2 = params["w2"], params["b2"]
    w3, b3 = params["w3"], params["b3"]

    B, in_dim = x.shape
    out_dim = w3.shape[1]

    TM, chunk = _choose_tile(B, tm, chunk)
    grid = (pl.cdiv(B, TM),)                 # ragged edge block masked by Pallas

    resident = lambda a: pl.BlockSpec(a.shape, lambda i: (0, 0))  # VMEM-resident weights

    weight_bytes = sum(int(p.size) * p.dtype.itemsize
                       for p in (w1, b1, w2, b2, w3, b3))
    cost = pl.CostEstimate(
        flops=2 * B * (in_dim * 128 + 128 * 128 + 128 * out_dim),
        transcendentals=0,
        bytes_accessed=B * in_dim * 4 + B * out_dim * 4 + weight_bytes,
    )

    return pl.pallas_call(
        make_dqn_kernel(TM, chunk),
        out_shape=jax.ShapeDtypeStruct((B, out_dim), jnp.float32),
        grid=grid,
        in_specs=[
            pl.BlockSpec((TM, in_dim), lambda i: (i, 0)),   # batch-tiled x (f32, cast in-kernel)
            resident(w1), resident(b1),
            resident(w2), resident(b2),
            resident(w3), resident(b3),
        ],
        out_specs=pl.BlockSpec((TM, out_dim), lambda i: (i, 0)),  # narrow output store
        compiler_params=pltpu.CompilerParams(
            dimension_semantics=("parallel",),              # megacore split on v7x
            vmem_limit_bytes=32 * 1024 * 1024,              # safe on v5e/v6e/v7x
        ),
        cost_estimate=cost,
    )(x, w1, b1, w2, b2, w3, b3)


def init_params(key, input_dim, output_dim, h2_pad=128):
    """Mirrors PyTorch nn.Linear default init (uniform +-1/sqrt(fan_in), weight
    shape (out,in)), transposed to (in,out) for x @ W. Layer 2 is zero-padded to
    128 output lanes and layer 3 to 128 input rows (exact zeros -> identical math,
    lane-dense h2). The final layer is NOT lane-padded: output stays (B, out_dim)."""
    dims = [(128, input_dim), (64, 128), (output_dim, 64)]
    keys = jax.random.split(key, 6)
    params = {}
    for i, (out_f, in_f) in enumerate(dims, start=1):
        bound = 1.0 / (in_f ** 0.5)
        w = jax.random.uniform(keys[2 * (i - 1)], (out_f, in_f),
                               jnp.float32, -bound, bound)
        b = jax.random.uniform(keys[2 * (i - 1) + 1], (out_f,),
                               jnp.float32, -bound, bound)
        w_t = jnp.transpose(w)                 # (in, out)
        b2d = b.reshape(1, out_f)
        if i == 2:                             # lane-pad hidden-2 to 128
            w_t = jnp.pad(w_t, ((0, 0), (0, h2_pad - out_f)))
            b2d = jnp.pad(b2d, ((0, 0), (0, h2_pad - out_f)))
        if i == 3:                             # matching zero input-rows for layer 3
            w_t = jnp.pad(w_t, ((0, h2_pad - in_f), (0, 0)))
        params[f"w{i}"] = w_t.astype(jnp.bfloat16)   # bf16 weights (MXU fast path)
        params[f"b{i}"] = b2d.astype(jnp.float32)    # f32 biases (elementwise add)
    return params


def reference_forward(x, params):
    """Pure-JAX reference with the same bf16-input / f32-accum numerics."""
    xb = x.astype(jnp.bfloat16)
    h1 = jnp.maximum(
        jnp.dot(xb, params["w1"], preferred_element_type=jnp.float32) + params["b1"], 0.0)
    h2 = jnp.maximum(
        jnp.dot(h1.astype(jnp.bfloat16), params["w2"],
                preferred_element_type=jnp.float32) + params["b2"], 0.0)
    return jnp.dot(h2.astype(jnp.bfloat16), params["w3"],
                   preferred_element_type=jnp.float32) + params["b3"]


if __name__ == "__main__":
    key = jax.random.PRNGKey(0)
    k_x, k_p = jax.random.split(key)

    batch, input_dim, output_dim = 8, 32, 8
    x = jax.random.normal(k_x, (batch, input_dim), jnp.float32)
    params = init_params(k_p, input_dim, output_dim)

    out = jax.block_until_ready(dqn_forward(x, params))
    ref = reference_forward(x, params)

    assert out.shape == (batch, output_dim)
    assert jnp.allclose(out, ref, atol=5e-3, rtol=5e-3), \
        float(jnp.max(jnp.abs(out - ref)))

    print("KERNEL_OK")
</pallas_src>

<mosaic_0001>
module attributes {stable_mosaic.version = 11 : i64} {
  func.func @kernel(%arg0: i32, %arg1: memref<8x32xf32, #tpu.memory_space<vmem>>, %arg2: memref<32x128xbf16, #tpu.memory_space<vmem>>, %arg3: memref<1x128xf32, #tpu.memory_space<vmem>>, %arg4: memref<128x128xbf16, #tpu.memory_space<vmem>>, %arg5: memref<1x128xf32, #tpu.memory_space<vmem>>, %arg6: memref<128x8xbf16, #tpu.memory_space<vmem>>, %arg7: memref<1x8xf32, #tpu.memory_space<vmem>>, %arg8: memref<8x8xf32, #tpu.memory_space<vmem>>) attributes {dimension_semantics = [#tpu.dimension_semantics<parallel>], iteration_bounds = array<i64: 1>, scalar_prefetch = 0 : i64, scratch_operands = 0 : i64, tpu.core_type = #tpu.core_type<tc>, window_params = [{transform_indices = @transform_0, window_bounds = array<i64: 8, 32>}, {pipeline_mode = #tpu.pipeline_mode<synchronous>, transform_indices = @transform_1, window_bounds = array<i64: 32, 128>}, {pipeline_mode = #tpu.pipeline_mode<synchronous>, transform_indices = @transform_2, window_bounds = array<i64: 1, 128>}, {pipeline_mode = #tpu.pipeline_mode<synchronous>, transform_indices = @transform_3, window_bounds = array<i64: 128, 128>}, {pipeline_mode = #tpu.pipeline_mode<synchronous>, transform_indices = @transform_4, window_bounds = array<i64: 1, 128>}, {pipeline_mode = #tpu.pipeline_mode<synchronous>, transform_indices = @transform_5, window_bounds = array<i64: 128, 8>}, {pipeline_mode = #tpu.pipeline_mode<synchronous>, transform_indices = @transform_6, window_bounds = array<i64: 1, 8>}, {transform_indices = @transform_7, window_bounds = array<i64: 8, 8>}]} {
    %c0 = arith.constant 0 : index
    %c0_0 = arith.constant 0 : index
    %0 = vector.load %arg2[%c0, %c0_0] : memref<32x128xbf16, #tpu.memory_space<vmem>>, vector<32x128xbf16>
    %c0_1 = arith.constant 0 : index
    %c0_2 = arith.constant 0 : index
    %1 = vector.load %arg3[%c0_1, %c0_2] : memref<1x128xf32, #tpu.memory_space<vmem>>, vector<1x128xf32>
    %c0_3 = arith.constant 0 : index
    %c0_4 = arith.constant 0 : index
    %2 = vector.load %arg4[%c0_3, %c0_4] : memref<128x128xbf16, #tpu.memory_space<vmem>>, vector<128x128xbf16>
    %c0_5 = arith.constant 0 : index
    %c0_6 = arith.constant 0 : index
    %3 = vector.load %arg5[%c0_5, %c0_6] : memref<1x128xf32, #tpu.memory_space<vmem>>, vector<1x128xf32>
    %c0_7 = arith.constant 0 : index
    %c0_8 = arith.constant 0 : index
    %4 = vector.load %arg6[%c0_7, %c0_8] : memref<128x8xbf16, #tpu.memory_space<vmem>>, vector<128x8xbf16>
    %c0_9 = arith.constant 0 : index
    %c0_10 = arith.constant 0 : index
    %5 = vector.load %arg7[%c0_9, %c0_10] : memref<1x8xf32, #tpu.memory_space<vmem>>, vector<1x8xf32>
    %c0_11 = arith.constant 0 : index
    %c0_12 = arith.constant 0 : index
    %6 = vector.load %arg1[%c0_11, %c0_12] : memref<8x32xf32, #tpu.memory_space<vmem>>, vector<8x32xf32>
    %7 = arith.truncf %6 : vector<8x32xf32> to vector<8x32xbf16>
    %cst = arith.constant dense<0.000000e+00> : vector<8x128xf32>
    %8 = tpu.matmul %7, %0, %cst {dimension_numbers = #tpu.dot_dimension_numbers<[1], [0], [0], [1], [0, 0, 1, 1], [], []>} : vector<8x32xbf16>, vector<32x128xbf16>, vector<8x128xf32> -> vector<8x128xf32>
    %9 = vector.broadcast %1 : vector<1x128xf32> to vector<8x128xf32>
    %10 = arith.addf %8, %9 : vector<8x128xf32>
    %cst_13 = arith.constant 0.000000e+00 : f32
    %11 = vector.broadcast %cst_13 : f32 to vector<8x128xf32>
    %12 = arith.maximumf %10, %11 : vector<8x128xf32>
    %13 = arith.truncf %12 : vector<8x128xf32> to vector<8x128xbf16>
    %cst_14 = arith.constant dense<0.000000e+00> : vector<8x128xf32>
    %14 = tpu.matmul %13, %2, %cst_14 {dimension_numbers = #tpu.dot_dimension_numbers<[1], [0], [0], [1], [0, 0, 1, 1], [], []>} : vector<8x128xbf16>, vector<128x128xbf16>, vector<8x128xf32> -> vector<8x128xf32>
    %15 = vector.broadcast %3 : vector<1x128xf32> to vector<8x128xf32>
    %16 = arith.addf %14, %15 : vector<8x128xf32>
    %cst_15 = arith.constant 0.000000e+00 : f32
    %17 = vector.broadcast %cst_15 : f32 to vector<8x128xf32>
    %18 = arith.maximumf %16, %17 : vector<8x128xf32>
    %19 = arith.truncf %18 : vector<8x128xf32> to vector<8x128xbf16>
    %cst_16 = arith.constant dense<0.000000e+00> : vector<8x8xf32>
    %20 = tpu.matmul %19, %4, %cst_16 {dimension_numbers = #tpu.dot_dimension_numbers<[1], [0], [0], [1], [0, 0, 1, 1], [], []>} : vector<8x128xbf16>, vector<128x8xbf16>, vector<8x8xf32> -> vector<8x8xf32>
    %21 = vector.broadcast %5 : vector<1x8xf32> to vector<8x8xf32>
    %22 = arith.addf %20, %21 : vector<8x8xf32>
    %c0_17 = arith.constant 0 : index
    %c0_18 = arith.constant 0 : index
    %23 = vector.load %arg8[%c0_17, %c0_18] : memref<8x8xf32, #tpu.memory_space<vmem>>, vector<8x8xf32>
    tpu.vector_store %arg8[%c0_17, %c0_18], %22 {strides = array<i32>} : memref<8x8xf32, #tpu.memory_space<vmem>>, vector<8x8xf32>,
    return
  }
  func.func @transform_0(%arg0: i32) -> (i32, i32) {
    %c0_i32 = arith.constant 0 : i32
    %c0_i32_0 = arith.constant 0 : i32
    return %arg0, %c0_i32 : i32, i32
  }
  func.func @transform_1(%arg0: i32) -> (i32, i32) {
    %c0_i32 = arith.constant 0 : i32
    %c0_i32_0 = arith.constant 0 : i32
    %c0_i32_1 = arith.constant 0 : i32
    return %c0_i32, %c0_i32_0 : i32, i32
  }
  func.func @transform_2(%arg0: i32) -> (i32, i32) {
    %c0_i32 = arith.constant 0 : i32
    %c0_i32_0 = arith.constant 0 : i32
    %c0_i32_1 = arith.constant 0 : i32
    return %c0_i32, %c0_i32_0 : i32, i32
  }
  func.func @transform_3(%arg0: i32) -> (i32, i32) {
    %c0_i32 = arith.constant 0 : i32
    %c0_i32_0 = arith.constant 0 : i32
    %c0_i32_1 = arith.constant 0 : i32
    return %c0_i32, %c0_i32_0 : i32, i32
  }
  func.func @transform_4(%arg0: i32) -> (i32, i32) {
    %c0_i32 = arith.constant 0 : i32
    %c0_i32_0 = arith.constant 0 : i32
    %c0_i32_1 = arith.constant 0 : i32
    return %c0_i32, %c0_i32_0 : i32, i32
  }
  func.func @transform_5(%arg0: i32) -> (i32, i32) {
    %c0_i32 = arith.constant 0 : i32
    %c0_i32_0 = arith.constant 0 : i32
    %c0_i32_1 = arith.constant 0 : i32
    return %c0_i32, %c0_i32_0 : i32, i32
  }
  func.func @transform_6(%arg0: i32) -> (i32, i32) {
    %c0_i32 = arith.constant 0 : i32
    %c0_i32_0 = arith.constant 0 : i32
    %c0_i32_1 = arith.constant 0 : i32
    return %c0_i32, %c0_i32_0 : i32, i32
  }
  func.func @transform_7(%arg0: i32) -> (i32, i32) {
    %c0_i32 = arith.constant 0 : i32
    %c0_i32_0 = arith.constant 0 : i32
    return %arg0, %c0_i32 : i32, i32
  }
}

</mosaic_0001>

<llo_original>
// kernel: tpu_custom_call.1
$region0: #{tpu_custom_call.1}
  #allocation0 [shape = 'u32[]', space=smem, size = 0x4, offset = 0x4, fixed_abs, tag = 'smem constant byte address 0x4 - core index']
  #allocation1 [shape = 'u32[144,128]{1,0:T(1,128)}', space=vmem, size = 0x12000, scoped, tag = 'internal scratch']
  %s0 = inlined_call_operand.vmem [shape: f32[8,32], index: 0, kind: input, shape index: {}]
  %s1 = inlined_call_operand.hbm [shape: bf16[32,128], index: 1, kind: input, shape index: {}]
  %s2 = inlined_call_operand.vmem [shape: f32[1,128], index: 2, kind: input, shape index: {}]
  %s3 = inlined_call_operand.vmem [shape: bf16[128,128], index: 3, kind: input, shape index: {}]
  %s4 = inlined_call_operand.vmem [shape: f32[1,128], index: 4, kind: input, shape index: {}]
  %s5 = inlined_call_operand.vmem [shape: bf16[128,8], index: 5, kind: input, shape index: {}]
  %s6 = inlined_call_operand.vmem [shape: f32[1,8], index: 6, kind: input, shape index: {}]
  %s7 = inlined_call_operand.hbm [shape: f32[8,8], index: 7, kind: output, shape index: {}]
  %s8 = sld [smem:[#allocation0]]
  $region42: #{tpu_custom_call.1} parent=0
    _
  %s10 = ssub.s32 1, %s8
  %s11 = scalar_select 0, %s10, %s8
  $region1: #{tpu_custom_call.1} parent=0
    #allocation2 [shape = 'u8[8192]{0}', space=vmem, size = 0x2000, scoped, tag = 'input window, operand 1, single buffered']
    #allocation3 [shape = 's32[1]{0}', space=sflag, size = 0x4, scoped, tag = 'scoped memory for tpu_custom_call.1']
    #allocation4 [shape = 's32[1]{0}', space=sflag, size = 0x4, scoped, tag = 'scoped memory for tpu_custom_call.1']
    #allocation5 [shape = 'u8[4096]{0}', space=vmem, size = 0x1000, scoped, tag = 'output window, operand 0, single buffered']
    %12 = vsyncpa [#allocation3], 0
    %13 = vsyncpa [#allocation4], 0
    // Predicated region
    $region2: #{tpu_custom_call.1} parent=1 // pred_check
      _
    $region3: #{tpu_custom_call.1} parent=1 // pred_check_branch
      %15 = sbr.rel (0) target = $region5
    $region4: #{tpu_custom_call.1} parent=1 // pred_region
      _
    $region5: #{tpu_custom_call.1} parent=1 // pred_fallthru
      _
    // Predicated region
    $region6: #{tpu_custom_call.1} parent=1 // pred_check
      _
    $region7: #{tpu_custom_call.1} parent=1 // pred_check_branch
      %17 = sbr.rel (0) target = $region9
    $region8: #{tpu_custom_call.1} parent=1 // pred_region
      %s19 = ssub.s32 256, 256
      %20 = vsyncadd [#allocation3], %s19
      %s21 = sshll.u32 [#allocation2], 4
      %s22 = int_to_ptr.vmem [resolvable:$true] %s21
      %27 = dma.hbm_to_vmem [thread:$0]  %s1, 256, %s22, [#allocation3], 64, 64, 4
    $region9: #{tpu_custom_call.1} parent=1 // pred_fallthru
      _
    // Predicated region
    $region10: #{tpu_custom_call.1} parent=1 // pred_check
      _
    $region11: #{tpu_custom_call.1} parent=1 // pred_check_branch
      %29 = sbr.rel (0) target = $region13
    $region12: #{tpu_custom_call.1} parent=1 // pred_region
      _
    $region13: #{tpu_custom_call.1} parent=1 // pred_fallthru
      _
    // Predicated region
    $region14: #{tpu_custom_call.1} parent=1 // pred_check
      _
    $region15: #{tpu_custom_call.1} parent=1 // pred_check_branch
      %31 = sbr.rel (0) target = $region17
    $region16: #{tpu_custom_call.1} parent=1 // pred_region
      _
    $region17: #{tpu_custom_call.1} parent=1 // pred_fallthru
      _
    // Predicated region
    $region18: #{tpu_custom_call.1} parent=1 // pred_check
      _
    $region19: #{tpu_custom_call.1} parent=1 // pred_check_branch
      %33 = sbr.rel (0) target = $region21
    $region20: #{tpu_custom_call.1} parent=1 // pred_region
      _
    $region21: #{tpu_custom_call.1} parent=1 // pred_fallthru
      _
    // Predicated region
    $region22: #{tpu_custom_call.1} parent=1 // pred_check
      _
    $region23: #{tpu_custom_call.1} parent=1 // pred_check_branch
      %35 = sbr.rel (0) target = $region25
    $region24: #{tpu_custom_call.1} parent=1 // pred_region
      _
    $region25: #{tpu_custom_call.1} parent=1 // pred_fallthru
      _
    // Predicated region
    $region26: #{tpu_custom_call.1} parent=1 // pred_check
      _
    $region27: #{tpu_custom_call.1} parent=1 // pred_check_branch
      %37 = sbr.rel (0) target = $region29
    $region28: #{tpu_custom_call.1} parent=1 // pred_region
      _
    $region29: #{tpu_custom_call.1} parent=1 // pred_fallthru
      _
    // Predicated region
    $region30: #{tpu_custom_call.1} parent=1 // pred_check
      _
    $region31: #{tpu_custom_call.1} parent=1 // pred_check_branch
      %39 = sbr.rel (0) target = $region33
    $region32: #{tpu_custom_call.1} parent=1 // pred_region
      %40 = dma.done [#allocation3], 256
    $region33: #{tpu_custom_call.1} parent=1 // pred_fallthru
      _
    %v42 = vld [vmem:[#allocation2] sm:$0xf]
    %v43 = vld [vmem:[#allocation2 + $0x4] sm:$0xf]
    %v44 = vld [vmem:[#allocation2 + $0x8] sm:$0xf]
    %v45 = vld [vmem:[#allocation2 + $0xc] sm:$0xf]
    %v46 = vld [vmem:[%s2] sm:$0x1]
    %v47 = vld [vmem:[%s3] sm:$0xf]
    %v48 = vld [vmem:[%s3 + $0x4] sm:$0xf]
    %v49 = vld [vmem:[%s3 + $0x8] sm:$0xf]
    %v50 = vld [vmem:[%s3 + $0xc] sm:$0xf]
    %v51 = vld [vmem:[%s3 + $0x10] sm:$0xf]
    %v52 = vld [vmem:[%s3 + $0x14] sm:$0xf]
    %v53 = vld [vmem:[%s3 + $0x18] sm:$0xf]
    %v54 = vld [vmem:[%s3 + $0x1c] sm:$0xf]
    %v55 = vld [vmem:[%s3 + $0x20] sm:$0xf]
    %v56 = vld [vmem:[%s3 + $0x24] sm:$0xf]
    %v57 = vld [vmem:[%s3 + $0x28] sm:$0xf]
    %v58 = vld [vmem:[%s3 + $0x2c] sm:$0xf]
    %v59 = vld [vmem:[%s3 + $0x30] sm:$0xf]
    %v60 = vld [vmem:[%s3 + $0x34] sm:$0xf]
    %v61 = vld [vmem:[%s3 + $0x38] sm:$0xf]
    %v62 = vld [vmem:[%s3 + $0x3c] sm:$0xf]
    %v63 = vld [vmem:[%s4] sm:$0x1]
    %v64 = vld [vmem:[%s5] sm:$0xf]
    %v65 = vld [vmem:[%s5 + $0x4] sm:$0xf]
    %v66 = vld [vmem:[%s5 + $0x8] sm:$0xf]
    %v67 = vld [vmem:[%s5 + $0xc] sm:$0xf]
    %v68 = vld [vmem:[%s5 + $0x10] sm:$0xf]
    %v69 = vld [vmem:[%s5 + $0x14] sm:$0xf]
    %v70 = vld [vmem:[%s5 + $0x18] sm:$0xf]
    %v71 = vld [vmem:[%s5 + $0x1c] sm:$0xf]
    %v72 = vld [vmem:[%s5 + $0x20] sm:$0xf]
    %v73 = vld [vmem:[%s5 + $0x24] sm:$0xf]
    %v74 = vld [vmem:[%s5 + $0x28] sm:$0xf]
    %v75 = vld [vmem:[%s5 + $0x2c] sm:$0xf]
    %v76 = vld [vmem:[%s5 + $0x30] sm:$0xf]
    %v77 = vld [vmem:[%s5 + $0x34] sm:$0xf]
    %v78 = vld [vmem:[%s5 + $0x38] sm:$0xf]
    %v79 = vld [vmem:[%s5 + $0x3c] sm:$0xf]
    %v80 = vld [vmem:[%s6] sm:$0x1]
    %v81 = vld [vmem:[%s0] sm:$0xff]
    %v82 = vpack.c.bf16 %v81, %v81
    %v84 = vlaneseq
    %v85 = vshrl.u32 %v84, 7
    %v86 = vsub.s32 0, %v85
    %v87 = vrot.slane %v46, %v86
    %v93 = vunpack.c.l.b16 %v42
    %v94 = vunpack.c.l.b16 %v43
    %v95 = vunpack.c.l.b16 %v44
    %v96 = vunpack.c.l.b16 %v45
    %v97 = vpack.c.b16 %v94, %v93
    %v98 = vpack.c.b16 %v96, %v95
    %vm101 = vcmask 261120
    %v103 = vsel %vm101, %v82, 0
    %105 = vmatprep.subr.bf16.mxu0 0
    %106 = vmatpush1.bf16.msra.mxu0 %v97
    %107 = vmatprep.subr.bf16.mxu0 0
    %108 = vmatpush1.bf16.msra.mxu0 %v98
    %109 = vmatprep.subr.bf16.mxu0 0
    %110 = vmatpush1.bf16.msra.mxu0 0
    %111 = vmatprep.subr.bf16.mxu0 0
    %112 = vmatpush1.bf16.msra.mxu0 0
    %113 = vmatprep.subr.bf16.mxu0 0
    %114 = vmatpush1.bf16.msra.mxu0 0
    %115 = vmatprep.subr.bf16.mxu0 0
    %116 = vmatpush1.bf16.msra.mxu0 0
    %117 = vmatprep.subr.bf16.mxu0 0
    %118 = vmatpush1.bf16.msra.mxu0 0
    %119 = vmatprep.subr.bf16.mxu0 0
    %120 = vmatpush1.bf16.msra.mxu0 0
    %121 = vmatprep.subr.bf16.mxu0 0
    %122 = vmatpush1.bf16.msra.mxu0 0
    %123 = vmatprep.subr.bf16.mxu0 0
    %124 = vmatpush1.bf16.msra.mxu0 0
    %125 = vmatprep.subr.bf16.mxu0 0
    %126 = vmatpush1.bf16.msra.mxu0 0
    %127 = vmatprep.subr.bf16.mxu0 0
    %128 = vmatpush1.bf16.msra.mxu0 0
    %129 = vmatprep.subr.bf16.mxu0 0
    %130 = vmatpush1.bf16.msra.mxu0 0
    %131 = vmatprep.subr.bf16.mxu0 0
    %132 = vmatpush1.bf16.msra.mxu0 0
    %133 = vmatprep.subr.bf16.mxu0 0
    %134 = vmatpush1.bf16.msra.mxu0 0
    %135 = vmatprep.subr.bf16.mxu0 0
    %136 = vmatpush1.bf16.msra.mxu0 0
    %137 = vmatprep.mubr.bf16.mxu0 0
    %138 = vmatmul.mubr.bf16.gmra.mrb[0].mxu0 %v103
    %v139 = vpop.f32.mrb[0].mxu0
    %v140 = vadd.f32 %v87, %v139
    %v141 = vpop.f32.mrb[0].mxu0
    %v142 = vpop.f32.mrb[0].mxu0
    %v143 = vpop.f32.mrb[0].mxu0
    %144 = vdwg.mxu0
    %v145 = vmax.f32 %v140, 0.0
    %v146 = vpack.c.bf16 %v145, %v145
    %v148 = vlaneseq
    %v149 = vshrl.u32 %v148, 7
    %v150 = vsub.s32 0, %v149
    %v151 = vrot.slane %v63, %v150
    %v169 = vunpack.c.l.b16 %v47
    %v170 = vunpack.c.l.b16 %v48
    %v171 = vunpack.c.l.b16 %v49
    %v172 = vunpack.c.l.b16 %v50
    %v173 = vunpack.c.l.b16 %v51
    %v174 = vunpack.c.l.b16 %v52
    %v175 = vunpack.c.l.b16 %v53
    %v176 = vunpack.c.l.b16 %v54
    %v177 = vunpack.c.l.b16 %v55
    %v178 = vunpack.c.l.b16 %v56
    %v179 = vunpack.c.l.b16 %v57
    %v180 = vunpack.c.l.b16 %v58
    %v181 = vunpack.c.l.b16 %v59
    %v182 = vunpack.c.l.b16 %v60
    %v183 = vunpack.c.l.b16 %v61
    %v184 = vunpack.c.l.b16 %v62
    %v185 = vpack.c.b16 %v170, %v169
    %v186 = vpack.c.b16 %v172, %v171
    %v187 = vpack.c.b16 %v174, %v173
    %v188 = vpack.c.b16 %v176, %v175
    %v189 = vpack.c.b16 %v178, %v177
    %v190 = vpack.c.b16 %v180, %v179
    %v191 = vpack.c.b16 %v182, %v181
    %v192 = vpack.c.b16 %v184, %v183
    %201 = vmatprep.subr.bf16.mxu0 0
    %202 = vmatpush1.bf16.msra.mxu0 %v185
    %203 = vmatprep.subr.bf16.mxu0 0
    %204 = vmatpush1.bf16.msra.mxu0 %v186
    %205 = vmatprep.subr.bf16.mxu0 0
    %206 = vmatpush1.bf16.msra.mxu0 %v187
    %207 = vmatprep.subr.bf16.mxu0 0
    %208 = vmatpush1.bf16.msra.mxu0 %v188
    %209 = vmatprep.subr.bf16.mxu0 0
    %210 = vmatpush1.bf16.msra.mxu0 %v189
    %211 = vmatprep.subr.bf16.mxu0 0
    %212 = vmatpush1.bf16.msra.mxu0 %v190
    %213 = vmatprep.subr.bf16.mxu0 0
    %214 = vmatpush1.bf16.msra.mxu0 %v191
    %215 = vmatprep.subr.bf16.mxu0 0
    %216 = vmatpush1.bf16.msra.mxu0 %v192
    %217 = vmatprep.subr.bf16.mxu0 0
    %218 = vmatpush1.bf16.msra.mxu0 0
    %219 = vmatprep.subr.bf16.mxu0 0
    %220 = vmatpush1.bf16.msra.mxu0 0
    %221 = vmatprep.subr.bf16.mxu0 0
    %222 = vmatpush1.bf16.msra.mxu0 0
    %223 = vmatprep.subr.bf16.mxu0 0
    %224 = vmatpush1.bf16.msra.mxu0 0
    %225 = vmatprep.subr.bf16.mxu0 0
    %226 = vmatpush1.bf16.msra.mxu0 0
    %227 = vmatprep.subr.bf16.mxu0 0
    %228 = vmatpush1.bf16.msra.mxu0 0
    %229 = vmatprep.subr.bf16.mxu0 0
    %230 = vmatpush1.bf16.msra.mxu0 0
    %231 = vmatprep.subr.bf16.mxu0 0
    %232 = vmatpush1.bf16.msra.mxu0 0
    %233 = vmatprep.mubr.bf16.mxu0 0
    %234 = vmatmul.mubr.bf16.gmra.mrb[0].mxu0 %v146
    %v235 = vpop.f32.mrb[0].mxu0
    %v236 = vadd.f32 %v151, %v235
    %v237 = vpop.f32.mrb[0].mxu0
    %v238 = vpop.f32.mrb[0].mxu0
    %v239 = vpop.f32.mrb[0].mxu0
    %240 = vdwg.mxu0
    %v241 = vmax.f32 %v236, 0.0
    %v242 = vpack.c.bf16 %v241, %v241
    %v244 = vlaneseq
    %v245 = vshrl.u32 %v244, 7
    %v246 = vsub.s32 0, %v245
    %v247 = vrot.slane %v80, %v246
    %v265 = vunpack.c.l.b16 %v64
    %v266 = vunpack.c.l.b16 %v65
    %v267 = vunpack.c.l.b16 %v66
    %v268 = vunpack.c.l.b16 %v67
    %v269 = vunpack.c.l.b16 %v68
    %v270 = vunpack.c.l.b16 %v69
    %v271 = vunpack.c.l.b16 %v70
    %v272 = vunpack.c.l.b16 %v71
    %v273 = vunpack.c.l.b16 %v72
    %v274 = vunpack.c.l.b16 %v73
    %v275 = vunpack.c.l.b16 %v74
    %v276 = vunpack.c.l.b16 %v75
    %v277 = vunpack.c.l.b16 %v76
    %v278 = vunpack.c.l.b16 %v77
    %v279 = vunpack.c.l.b16 %v78
    %v280 = vunpack.c.l.b16 %v79
    %v281 = vpack.c.b16 %v266, %v265
    %v282 = vpack.c.b16 %v268, %v267
    %v283 = vpack.c.b16 %v270, %v269
    %v284 = vpack.c.b16 %v272, %v271
    %v285 = vpack.c.b16 %v274, %v273
    %v286 = vpack.c.b16 %v276, %v275
    %v287 = vpack.c.b16 %v278, %v277
    %v288 = vpack.c.b16 %v280, %v279
    %297 = vmatprep.subr.bf16.mxu0 0
    %298 = vmatpush1.bf16.msra.mxu0 %v281
    %299 = vmatprep.subr.bf16.mxu0 0
    %300 = vmatpush1.bf16.msra.mxu0 %v282
    %301 = vmatprep.subr.bf16.mxu0 0
    %302 = vmatpush1.bf16.msra.mxu0 %v283
    %303 = vmatprep.subr.bf16.mxu0 0
    %304 = vmatpush1.bf16.msra.mxu0 %v284
    %305 = vmatprep.subr.bf16.mxu0 0
    %306 = vmatpush1.bf16.msra.mxu0 %v285
    %307 = vmatprep.subr.bf16.mxu0 0
    %308 = vmatpush1.bf16.msra.mxu0 %v286
    %309 = vmatprep.subr.bf16.mxu0 0
    %310 = vmatpush1.bf16.msra.mxu0 %v287
    %311 = vmatprep.subr.bf16.mxu0 0
    %312 = vmatpush1.bf16.msra.mxu0 %v288
    %313 = vmatprep.subr.bf16.mxu0 0
    %314 = vmatpush1.bf16.msra.mxu0 0
    %315 = vmatprep.subr.bf16.mxu0 0
    %316 = vmatpush1.bf16.msra.mxu0 0
    %317 = vmatprep.subr.bf16.mxu0 0
    %318 = vmatpush1.bf16.msra.mxu0 0
    %319 = vmatprep.subr.bf16.mxu0 0
    %320 = vmatpush1.bf16.msra.mxu0 0
    %321 = vmatprep.subr.bf16.mxu0 0
    %322 = vmatpush1.bf16.msra.mxu0 0
    %323 = vmatprep.subr.bf16.mxu0 0
    %324 = vmatpush1.bf16.msra.mxu0 0
    %325 = vmatprep.subr.bf16.mxu0 0
    %326 = vmatpush1.bf16.msra.mxu0 0
    %327 = vmatprep.subr.bf16.mxu0 0
    %328 = vmatpush1.bf16.msra.mxu0 0
    %329 = vmatprep.mubr.bf16.mxu0 0
    %330 = vmatmul.mubr.bf16.gmra.mrb[0].mxu0 %v242
    %v331 = vpop.f32.mrb[0].mxu0
    %v332 = vadd.f32 %v247, %v331
    %v333 = vpop.f32.mrb[0].mxu0
    %v334 = vpop.f32.mrb[0].mxu0
    %v335 = vpop.f32.mrb[0].mxu0
    %336 = vdwg.mxu0
    %vm337 = vcmask 64512
    %338 = vst.msk [vmem:[#allocation5] sm:$0xff] %vm337, %v332
    // Predicated region
    $region34: #{tpu_custom_call.1} parent=1 // pred_check
      _
    $region35: #{tpu_custom_call.1} parent=1 // pred_check_branch
      %340 = sbr.rel (0) target = $region37
    $region36: #{tpu_custom_call.1} parent=1 // pred_region
      %s342 = ssub.s32 128, 128
      %343 = vsyncadd [#allocation4], %s342
      %s345 = sshll.u32 [#allocation5], 4
      %s346 = int_to_ptr.vmem [resolvable:$true] %s345
      %348 = dma.vmem_to_hbm [thread:$0]  %s346, 128, %s7, [#allocation4]
    $region37: #{tpu_custom_call.1} parent=1 // pred_fallthru
      _
    // Predicated region
    $region38: #{tpu_custom_call.1} parent=1 // pred_check
      _
    $region39: #{tpu_custom_call.1} parent=1 // pred_check_branch
      %350 = sbr.rel (0) target = $region41
    $region40: #{tpu_custom_call.1} parent=1 // pred_region
      %351 = dma.done [#allocation4], 128
    $region41: #{tpu_custom_call.1} parent=1 // pred_fallthru
      _
    %352 = vsyncpa [#allocation3], 1
    %353 = vsyncpa [#allocation4], 1

</llo_original>
